<compile_context>
chip_gen: v6e
topology: v6e:2x2x1
jax: 0.10.0
libtpu: 0.0.40
codegen_flags: <defaults>
</compile_context>

<pallas_src>
import functools
import math

import jax
import jax.numpy as jnp
from jax.experimental import pallas as pl
from jax.experimental.pallas import tpu as pltpu


def _round_up(v, m):
    return (v + m - 1) // m * m


def _single_conv_kernel(p_ref, w_ref, params_ref, o_ref, *,
                        bt, s, inv_s, neg_slope, eps):
    # p_ref:      (KKC, bt*S)   im2col patches for bt samples (lane = b-major, s-minor)
    # w_ref:      (Cout, KKC)   conv weight, tap-major / cin-minor
    # params_ref: (Cout, 3)     [bias | gamma | beta] columns (f32)
    # o_ref:      (Cout, bt*S)  lane-dense output (f32)
    params = params_ref[...]
    bias = params[:, 0:1]
    gamma = params[:, 1:2]
    beta = params[:, 2:3]

    # One wide MXU GEMM for the whole batch tile, f32 accumulation.
    conv = jnp.dot(w_ref[...], p_ref[...],
                   preferred_element_type=jnp.float32) + bias
    # LeakyReLU(neg_slope), single VALU max (valid for 0 <= neg_slope <= 1).
    act = jnp.maximum(conv, neg_slope * conv)

    # InstanceNorm2d per sample: stats over the spatial lanes of each static,
    # lane-aligned slice; biased variance; then affine.  bt is small by
    # construction, so the static unroll stays cheap.
    for bi in range(bt):
        a = act[:, bi * s:(bi + 1) * s]
        mean = jnp.sum(a, axis=-1, keepdims=True) * inv_s
        cent = a - mean
        var = jnp.sum(cent * cent, axis=-1, keepdims=True) * inv_s
        inv_std = jax.lax.rsqrt(var + eps)
        o_ref[:, bi * s:(bi + 1) * s] = cent * (inv_std * gamma) + beta


def single_conv_forward(x, weight, bias, gamma, beta, *,
                        stride=1, padding=1, neg_slope=0.01, eps=1e-5,
                        gemm_dtype=jnp.bfloat16):
    """x: (B, Cin, H, W); weight: (Cout, Cin, K, K); bias/gamma/beta: (Cout,)."""
    b, cin, h, w = x.shape
    cout, cin_w, k, k2 = weight.shape
    assert cin == cin_w and k == k2

    out_h = (h + 2 * padding - k) // stride + 1
    out_w = (w + 2 * padding - k) // stride + 1
    s = out_h * out_w
    kkc = k * k * cin

    # ---- generation-aware VMEM budget ----------------------------------
    try:
        vmem_cap = int(pltpu.get_tpu_info().vmem_capacity_bytes)
    except Exception:
        vmem_cap = 64 * 1024 * 1024  # conservative (v7x per-TC)
    max_block_bytes = min(8 << 20, vmem_cap // 16)

    gemm_itemsize = jnp.dtype(gemm_dtype).itemsize
    per_sample_bytes = (_round_up(kkc, 8) * s * gemm_itemsize
                        + _round_up(cout, 8) * s * 4)

    # ---- batch-tile selection -------------------------------------------
    # bt*S must be a multiple of 128 (lane-dense blocks / unmasked stores).
    bt_unit = 128 // math.gcd(s, 128)
    bt_budget = max(1, max_block_bytes // per_sample_bytes)   # VMEM cap
    bt_steps = max(1, b // max(1, min(4, b)))                 # keep >= min(4,B) steps
    bt = max(bt_unit, (min(bt_budget, bt_steps, 32) // bt_unit) * bt_unit)
    n_steps = pl.cdiv(b, bt)
    b_pad = n_steps * bt

    # ---- host-side layout plumbing (one-time slicing / reshaping) --------
    x = x.astype(gemm_dtype)
    x_pad = jnp.pad(x, ((0, 0), (0, 0), (padding, padding), (padding, padding)))
    xt = jnp.transpose(x_pad, (1, 0, 2, 3))                  # (Cin, B, Hp, Wp)
    views = []
    for kh in range(k):
        for kw in range(k):
            v = jax.lax.slice(
                xt,
                (0, 0, kh, kw),
                (cin, b, kh + (out_h - 1) * stride + 1,
                 kw + (out_w - 1) * stride + 1),
                (1, 1, stride, stride))                      # (Cin, B, oh, ow)
            views.append(v.reshape(cin, b * s))
    patches = jnp.concatenate(views, axis=0)                 # (KKC, B*S)
    if b_pad != b:
        patches = jnp.pad(patches, ((0, 0), (0, (b_pad - b) * s)))

    # Weight flattened so its reduce axis matches the patch row order
    # (kh outer, kw middle, cin inner).  Per-channel params packed as columns.
    w_mat = jnp.transpose(weight, (0, 2, 3, 1)).reshape(cout, kkc).astype(gemm_dtype)
    params = jnp.stack([bias, gamma, beta], axis=1).astype(jnp.float32)  # (Cout, 3)

    # ---- scoped VMEM limit (double-buffered blocks + constants + margin) --
    block_bytes = bt * per_sample_bytes
    const_bytes = (_round_up(cout, 8) * _round_up(kkc, 128) * gemm_itemsize
                   + _round_up(cout, 8) * 128 * 4)
    vmem_limit = int(min(max(4 * block_bytes + const_bytes + (8 << 20), 16 << 20),
                         min(vmem_cap // 2, 64 << 20)))

    kernel = functools.partial(
        _single_conv_kernel, bt=bt, s=s, inv_s=float(1.0 / s),
        neg_slope=float(neg_slope), eps=float(eps))

    out_flat = pl.pallas_call(
        kernel,
        out_shape=jax.ShapeDtypeStruct((cout, b_pad * s), jnp.float32),
        grid_spec=pltpu.PrefetchScalarGridSpec(
            num_scalar_prefetch=0,
            grid=(n_steps,),
            in_specs=[
                pl.BlockSpec((kkc, bt * s), lambda i: (0, i)),
                pl.BlockSpec((cout, kkc), lambda i: (0, 0)),
                pl.BlockSpec((cout, 3), lambda i: (0, 0)),
            ],
            out_specs=pl.BlockSpec((cout, bt * s), lambda i: (0, i)),
        ),
        compiler_params=pltpu.CompilerParams(
            dimension_semantics=("parallel",),
            vmem_limit_bytes=vmem_limit),
    )(patches, w_mat, params)

    out = out_flat.reshape(cout, b_pad, out_h, out_w)[:, :b]
    return jnp.transpose(out, (1, 0, 2, 3))


def _reference(x, weight, bias, gamma, beta, *, stride, padding,
               neg_slope=0.01, eps=1e-5):
    # Pure-JAX reference of the PyTorch SingleConv forward (f32).
    out = jax.lax.conv_general_dilated(
        x, weight, (stride, stride),
        [(padding, padding), (padding, padding)],
        dimension_numbers=("NCHW", "OIHW", "NCHW"))
    out = out + bias[None, :, None, None]
    out = jnp.where(out >= 0, out, neg_slope * out)
    mean = jnp.mean(out, axis=(2, 3), keepdims=True)
    var = jnp.mean((out - mean) ** 2, axis=(2, 3), keepdims=True)
    out = (out - mean) * jax.lax.rsqrt(var + eps)
    return out * gamma[None, :, None, None] + beta[None, :, None, None]


if __name__ == "__main__":
    key = jax.random.PRNGKey(0)
    kx, kw_, kb, kg, kbt = jax.random.split(key, 5)

    # Main case: lane-dense output spatial (16*16 = 256 lanes per sample).
    B, Cin, Cout, H, W, K = 2, 4, 8, 16, 16, 3
    x = jax.random.normal(kx, (B, Cin, H, W), dtype=jnp.float32)
    weight = jax.random.normal(kw_, (Cout, Cin, K, K), dtype=jnp.float32) * 0.1
    bias = jax.random.normal(kb, (Cout,), dtype=jnp.float32) * 0.1
    gamma = 1.0 + 0.1 * jax.random.normal(kg, (Cout,), dtype=jnp.float32)
    beta = 0.1 * jax.random.normal(kbt, (Cout,), dtype=jnp.float32)

    ref = _reference(x, weight, bias, gamma, beta, stride=1, padding=1)

    # 1) f32 GEMM path: tight check of the kernel math vs the f32 reference.
    out_f32 = jax.block_until_ready(single_conv_forward(
        x, weight, bias, gamma, beta, stride=1, padding=1,
        gemm_dtype=jnp.float32))
    assert out_f32.shape == ref.shape == (B, Cout, H, W)
    assert jnp.allclose(out_f32, ref, atol=1e-4, rtol=1e-4), "mismatch (f32 GEMM)"

    # 2) Default bf16 patch/weight stream (perf path): f32 accumulation keeps
    #    the error at the bf16-input quantization level.
    out_bf16 = jax.block_until_ready(single_conv_forward(
        x, weight, bias, gamma, beta, stride=1, padding=1))
    assert out_bf16.shape == ref.shape
    assert jnp.allclose(out_bf16, ref, atol=3e-2, rtol=3e-2), "mismatch (bf16 GEMM)"

    # 3) Strided conv: S=64 exercises the bt_unit lane-alignment path (bt=2).
    ref2 = _reference(x, weight, bias, gamma, beta, stride=2, padding=1)
    out2 = jax.block_until_ready(single_conv_forward(
        x, weight, bias, gamma, beta, stride=2, padding=1,
        gemm_dtype=jnp.float32))
    assert out2.shape == ref2.shape == (B, Cout, 8, 8)
    assert jnp.allclose(out2, ref2, atol=1e-4, rtol=1e-4), "mismatch (stride=2)"

    print("KERNEL_OK")
</pallas_src>

<mosaic_0001>
module attributes {stable_mosaic.version = 11 : i64} {
  func.func @_single_conv_kernel(%arg0: i32, %arg1: memref<36x256xf32, #tpu.memory_space<vmem>>, %arg2: memref<8x36xf32, #tpu.memory_space<vmem>>, %arg3: memref<8x3xf32, #tpu.memory_space<vmem>>, %arg4: memref<8x256xf32, #tpu.memory_space<vmem>>) attributes {dimension_semantics = [#tpu.dimension_semantics<parallel>], iteration_bounds = array<i64: 2>, scalar_prefetch = 0 : i64, scratch_operands = 0 : i64, tpu.core_type = #tpu.core_type<tc>, window_params = [{transform_indices = @transform_0, window_bounds = array<i64: 36, 256>}, {pipeline_mode = #tpu.pipeline_mode<synchronous>, transform_indices = @transform_1, window_bounds = array<i64: 8, 36>}, {pipeline_mode = #tpu.pipeline_mode<synchronous>, transform_indices = @transform_2, window_bounds = array<i64: 8, 3>}, {transform_indices = @transform_3, window_bounds = array<i64: 8, 256>}]} {
    %c0 = arith.constant 0 : index
    %c0_0 = arith.constant 0 : index
    %0 = vector.load %arg3[%c0, %c0_0] : memref<8x3xf32, #tpu.memory_space<vmem>>, vector<8x3xf32>
    %1 = vector.extract_strided_slice %0 {offsets = [0, 0], sizes = [8, 1], strides = [1, 1]} : vector<8x3xf32> to vector<8x1xf32>
    %2 = vector.extract_strided_slice %0 {offsets = [0, 1], sizes = [8, 1], strides = [1, 1]} : vector<8x3xf32> to vector<8x1xf32>
    %3 = vector.extract_strided_slice %0 {offsets = [0, 2], sizes = [8, 1], strides = [1, 1]} : vector<8x3xf32> to vector<8x1xf32>
    %c0_1 = arith.constant 0 : index
    %c0_2 = arith.constant 0 : index
    %4 = vector.load %arg2[%c0_1, %c0_2] : memref<8x36xf32, #tpu.memory_space<vmem>>, vector<8x36xf32>
    %c0_3 = arith.constant 0 : index
    %c0_4 = arith.constant 0 : index
    %5 = vector.load %arg1[%c0_3, %c0_4] : memref<36x256xf32, #tpu.memory_space<vmem>>, vector<36x256xf32>
    %cst = arith.constant dense<0.000000e+00> : vector<8x256xf32>
    %6 = tpu.matmul %4, %5, %cst {dimension_numbers = #tpu.dot_dimension_numbers<[1], [0], [0], [1], [0, 0, 1, 1], [], []>} : vector<8x36xf32>, vector<36x256xf32>, vector<8x256xf32> -> vector<8x256xf32>
    %7 = vector.broadcast %1 : vector<8x1xf32> to vector<8x256xf32>
    %8 = arith.addf %6, %7 : vector<8x256xf32>
    %cst_5 = arith.constant 0.00999999977 : f32
    %9 = vector.broadcast %cst_5 : f32 to vector<8x256xf32>
    %10 = arith.mulf %9, %8 : vector<8x256xf32>
    %11 = arith.maximumf %8, %10 : vector<8x256xf32>
    %cst_6 = arith.constant dense<0.000000e+00> : vector<8xf32>
    %12 = vector.multi_reduction <add>, %11, %cst_6 [1] : vector<8x256xf32> to vector<8xf32>
    %13 = vector.shape_cast %12 : vector<8xf32> to vector<8x1xf32>
    %cst_7 = arith.constant 3.906250e-03 : f32
    %14 = vector.broadcast %cst_7 : f32 to vector<8x1xf32>
    %15 = arith.mulf %13, %14 : vector<8x1xf32>
    %16 = vector.broadcast %15 : vector<8x1xf32> to vector<8x256xf32>
    %17 = arith.subf %11, %16 : vector<8x256xf32>
    %18 = arith.mulf %17, %17 : vector<8x256xf32>
    %cst_8 = arith.constant dense<0.000000e+00> : vector<8xf32>
    %19 = vector.multi_reduction <add>, %18, %cst_8 [1] : vector<8x256xf32> to vector<8xf32>
    %20 = vector.shape_cast %19 : vector<8xf32> to vector<8x1xf32>
    %cst_9 = arith.constant 3.906250e-03 : f32
    %21 = vector.broadcast %cst_9 : f32 to vector<8x1xf32>
    %22 = arith.mulf %20, %21 : vector<8x1xf32>
    %cst_10 = arith.constant 9.99999974E-6 : f32
    %23 = vector.broadcast %cst_10 : f32 to vector<8x1xf32>
    %24 = arith.addf %22, %23 : vector<8x1xf32>
    %25 = math.rsqrt %24 : vector<8x1xf32>
    %26 = arith.mulf %25, %2 : vector<8x1xf32>
    %27 = vector.broadcast %26 : vector<8x1xf32> to vector<8x256xf32>
    %28 = arith.mulf %17, %27 : vector<8x256xf32>
    %29 = vector.broadcast %3 : vector<8x1xf32> to vector<8x256xf32>
    %30 = arith.addf %28, %29 : vector<8x256xf32>
    %c0_11 = arith.constant 0 : index
    %c0_12 = arith.constant 0 : index
    %31 = vector.load %arg4[%c0_11, %c0_12] : memref<8x256xf32, #tpu.memory_space<vmem>>, vector<8x256xf32>
    tpu.vector_store %arg4[%c0_11, %c0_12], %30 {strides = array<i32>} : memref<8x256xf32, #tpu.memory_space<vmem>>, vector<8x256xf32>,
    return
  }
  func.func @transform_0(%arg0: i32) -> (i32, i32) {
    %c0_i32 = arith.constant 0 : i32
    %c0_i32_0 = arith.constant 0 : i32
    return %c0_i32, %arg0 : i32, i32
  }
  func.func @transform_1(%arg0: i32) -> (i32, i32) {
    %c0_i32 = arith.constant 0 : i32
    %c0_i32_0 = arith.constant 0 : i32
    %c0_i32_1 = arith.constant 0 : i32
    return %c0_i32, %c0_i32_0 : i32, i32
  }
  func.func @transform_2(%arg0: i32) -> (i32, i32) {
    %c0_i32 = arith.constant 0 : i32
    %c0_i32_0 = arith.constant 0 : i32
    %c0_i32_1 = arith.constant 0 : i32
    return %c0_i32, %c0_i32_0 : i32, i32
  }
  func.func @transform_3(%arg0: i32) -> (i32, i32) {
    %c0_i32 = arith.constant 0 : i32
    %c0_i32_0 = arith.constant 0 : i32
    return %c0_i32, %arg0 : i32, i32
  }
}

</mosaic_0001>

<llo_original>
// kernel: tpu_custom_call.1
$region0: #{tpu_custom_call.1}
  #allocation0 [shape = 'u32[]', space=smem, size = 0x4, offset = 0x4, fixed_abs, tag = 'smem constant byte address 0x4 - core index']
  #allocation1 [shape = 'u32[144,128]{1,0:T(1,128)}', space=vmem, size = 0x12000, scoped, tag = 'internal scratch']
  %s0 = inlined_call_operand.hbm [shape: f32[36,512], index: 0, kind: input, shape index: {}]
  %s1 = inlined_call_operand.vmem [shape: f32[8,36], index: 1, kind: input, shape index: {}]
  %s2 = inlined_call_operand.vmem [shape: f32[8,3], index: 2, kind: input, shape index: {}]
  %s3 = inlined_call_operand.hbm [shape: f32[8,512], index: 3, kind: output, shape index: {}]
  %s4 = sld [smem:[#allocation0]]
  $region49: #{tpu_custom_call.1} parent=0
    _
  %s6 = ssub.s32 1, %s4
  %s7 = scalar_select 0, %s6, %s4
  $region1: #{tpu_custom_call.1} parent=0
    #allocation2 [shape = 'u8[81920]{0}', space=vmem, size = 0x14000, scoped, tag = 'input window, operand 0']
    #allocation3 [shape = 's32[2]{0}', space=sflag, size = 0x8, scoped, tag = 'scoped memory for tpu_custom_call.1']
    #allocation4 [shape = 's32[2]{0}', space=sflag, size = 0x8, scoped, tag = 'scoped memory for tpu_custom_call.1']
    #allocation5 [shape = 'u8[16384]{0}', space=vmem, size = 0x4000, scoped, tag = 'output window, operand 0']
    %8 = vsyncpa [#allocation3], 0
    %s9 = scalar_lea.sflag [#allocation3], 1
    %10 = vsyncpa %s9, 0
    %11 = vsyncpa [#allocation4], 0
    %s12 = scalar_lea.sflag [#allocation4], 1
    %13 = vsyncpa %s12, 0
    loop: start=0, step=1, limit=4
    $region2: #{tpu_custom_call.1} parent=1 // loop_pre_header
      _
    $region3: #{tpu_custom_call.1} parent=1 // loop_header
      %s15 = sphi 0, %s19
      %p16 = scmp.ge.s32.totalorder %s15, 4
      %s25 = sphi 0, %s27
      %s28 = sphi 0, %s25
      %s29 = sphi 0, %s28
      %s45 = sphi 0, %s29
      %s49 = sphi 0, %s49
      %s51 = sphi 0, %s49
      %s52 = sphi 0, %s51
      %s66 = sphi 0, %s52
      %s70 = sphi 0, %s70
      %s72 = sphi 0, %s70
      %s73 = sphi 0, %s72
      %s87 = sphi 0, %s73
      %s93 = sphi 0, %s95
      %s96 = sphi 0, %s93
      %s97 = sphi 0, %s96
      %s113 = sphi 0, %s97
    $region4: #{tpu_custom_call.1} parent=1 // loop_header_branch
      %18 = sbr.rel (%p16) target = $region8
    $region5: #{tpu_custom_call.1} parent=1 // loop_body
      %s20 = ssub.s32 %s15, 1
      %s21 = ssub.s32 %s15, 2
      %s22 = sadd.s32 %s15, 1
      %s23 = ssub.s32 %s15, %s22
      %p24 = scmp.eq.s32.totalorder %s23, 0
      %s26 = sadd.s32 %s25, 1
      %s27 = scalar_select %p24, %s25, %s26
      %p30 = pneg %p24
      %p31 = scmp.eq.s32.totalorder %s15, 1
      %p32 = por %p30, %p31
      %p33 = scmp.ne.s32.totalorder %s25, %s28
      %p34 = scmp.eq.s32.totalorder %s15, 0
      %p35 = por %p33, %p34
      %p36 = scmp.ne.s32.totalorder %s25, %s28
      %p37 = scmp.eq.s32.totalorder %s20, 1
      %p38 = por %p36, %p37
      %p39 = scmp.ne.s32.totalorder %s28, %s29
      %p40 = scmp.eq.s32.totalorder %s20, 0
      %p41 = por %p39, %p40
      %p42 = scmp.ne.s32.totalorder %s28, %s29
      %p43 = scmp.eq.s32.totalorder %s21, 1
      %p44 = por %p42, %p43
      %p46 = scmp.ne.s32.totalorder %s29, %s45
      %p47 = scmp.eq.s32.totalorder %s21, 0
      %p48 = por %p46, %p47
      %s50 = sadd.s32 %s49, 1
      %p53 = scmp.eq.s32.totalorder %s15, 1
      %p54 = scmp.ne.s32.totalorder %s49, %s51
      %p55 = scmp.eq.s32.totalorder %s15, 0
      %p56 = por %p54, %p55
      %p57 = scmp.ne.s32.totalorder %s49, %s51
      %p58 = scmp.eq.s32.totalorder %s20, 1
      %p59 = por %p57, %p58
      %p60 = scmp.ne.s32.totalorder %s51, %s52
      %p61 = scmp.eq.s32.totalorder %s20, 0
      %p62 = por %p60, %p61
      %p63 = scmp.ne.s32.totalorder %s51, %s52
      %p64 = scmp.eq.s32.totalorder %s21, 1
      %p65 = por %p63, %p64
      %p67 = scmp.ne.s32.totalorder %s52, %s66
      %p68 = scmp.eq.s32.totalorder %s21, 0
      %p69 = por %p67, %p68
      %s71 = sadd.s32 %s70, 1
      %p74 = scmp.eq.s32.totalorder %s15, 1
      %p75 = scmp.ne.s32.totalorder %s70, %s72
      %p76 = scmp.eq.s32.totalorder %s15, 0
      %p77 = por %p75, %p76
      %p78 = scmp.ne.s32.totalorder %s70, %s72
      %p79 = scmp.eq.s32.totalorder %s20, 1
      %p80 = por %p78, %p79
      %p81 = scmp.ne.s32.totalorder %s72, %s73
      %p82 = scmp.eq.s32.totalorder %s20, 0
      %p83 = por %p81, %p82
      %p84 = scmp.ne.s32.totalorder %s72, %s73
      %p85 = scmp.eq.s32.totalorder %s21, 1
      %p86 = por %p84, %p85
      %p88 = scmp.ne.s32.totalorder %s73, %s87
      %p89 = scmp.eq.s32.totalorder %s21, 0
      %p90 = por %p88, %p89
      %s91 = ssub.s32 %s15, %s22
      %p92 = scmp.eq.s32.totalorder %s91, 0
      %s94 = sadd.s32 %s93, 1
      %s95 = scalar_select %p92, %s93, %s94
      %p98 = pneg %p92
      %p99 = scmp.eq.s32.totalorder %s15, 1
      %p100 = por %p98, %p99
      %p101 = scmp.ne.s32.totalorder %s93, %s96
      %p102 = scmp.eq.s32.totalorder %s15, 0
      %p103 = por %p101, %p102
      %p104 = scmp.ne.s32.totalorder %s93, %s96
      %p105 = scmp.eq.s32.totalorder %s20, 1
      %p106 = por %p104, %p105
      %p107 = scmp.ne.s32.totalorder %s96, %s97
      %p108 = scmp.eq.s32.totalorder %s20, 0
      %p109 = por %p107, %p108
      %p110 = scmp.ne.s32.totalorder %s96, %s97
      %p111 = scmp.eq.s32.totalorder %s21, 1
      %p112 = por %p110, %p111
      %p114 = scmp.ne.s32.totalorder %s97, %s113
      %p115 = scmp.eq.s32.totalorder %s21, 0
      %p116 = por %p114, %p115
      %p117 = scmp.le.s32.totalorder 1, %s15
      %p118 = scmp.lt.s32.totalorder %s15, 3
      %p119 = pnand %p117, %p118
      %p120 = pneg %p119
      // Predicated region
      $region9: #{tpu_custom_call.1} parent=5 // pred_check
        _
      $region10: #{tpu_custom_call.1} parent=5 // pred_check_branch
        %122 = sbr.rel (%p119) target = $region12
      $region11: #{tpu_custom_call.1} parent=5 // pred_region
        %s123 = ssub.s32 %s15, 1
        // Predicated region
        $region13: #{tpu_custom_call.1} parent=11 // pred_check
          %p124 = pneg %p62
        $region14: #{tpu_custom_call.1} parent=11 // pred_check_branch
          %126 = sbr.rel (%p124) target = $region16
        $region15: #{tpu_custom_call.1} parent=11 // pred_region
          _
        $region16: #{tpu_custom_call.1} parent=11 // pred_fallthru
          _
        // Predicated region
        $region17: #{tpu_custom_call.1} parent=11 // pred_check
          %p127 = pneg %p83
        $region18: #{tpu_custom_call.1} parent=11 // pred_check_branch
          %129 = sbr.rel (%p127) target = $region20
        $region19: #{tpu_custom_call.1} parent=11 // pred_region
          _
        $region20: #{tpu_custom_call.1} parent=11 // pred_fallthru
          _
      $region12: #{tpu_custom_call.1} parent=5 // pred_fallthru
        _
      %p130 = scmp.lt.s32.totalorder %s15, 2
      // Predicated region
      $region21: #{tpu_custom_call.1} parent=5 // pred_check
        %p131 = pneg %p130
      $region22: #{tpu_custom_call.1} parent=5 // pred_check_branch
        %133 = sbr.rel (%p131) target = $region24
      $region23: #{tpu_custom_call.1} parent=5 // pred_region
        // Predicated region
        $region25: #{tpu_custom_call.1} parent=23 // pred_check
          %p134 = pneg %p35
        $region26: #{tpu_custom_call.1} parent=23 // pred_check_branch
          %136 = sbr.rel (%p134) target = $region28
        $region27: #{tpu_custom_call.1} parent=23 // pred_region
          %s137 = sand.u32 %s25, 1
          %s138 = scalar_lea.sflag [#allocation3], %s137
          %s139 = sand.u32 %s25, 1
          %s140 = smul.addr %s139, 80
          %s141 = scalar_lea.vmem [#allocation2], %s140
          %s142 = smul.u32 2, %s15
          %s144 = ssub.s32 1280, 1280
          %145 = vsyncadd %s138, %s144
          %s146 = smul.addr %s142, 128
          %s147 = scalar_lea.hbm %s0, %s146
          %s148 = sshll.u32 %s141, 4
          %s149 = int_to_ptr.vmem [resolvable:$true] %s148
          %154 = dma.hbm_to_vmem [thread:$0]  %s147, 1280, %s149, %s138, 512, 256, 16
        $region28: #{tpu_custom_call.1} parent=23 // pred_fallthru
          _
      $region24: #{tpu_custom_call.1} parent=5 // pred_fallthru
        _
      %p155 = scmp.le.s32.totalorder 1, %s15
      %p156 = scmp.lt.s32.totalorder %s15, 3
      %p157 = pnand %p155, %p156
      %p158 = pneg %p157
      // Predicated region
      $region29: #{tpu_custom_call.1} parent=5 // pred_check
        _
      $region30: #{tpu_custom_call.1} parent=5 // pred_check_branch
        %160 = sbr.rel (%p157) target = $region32
      $region31: #{tpu_custom_call.1} parent=5 // pred_region
        %s161 = ssub.s32 %s15, 1
        %s162 = sand.u32 %s28, 1
        %s163 = scalar_lea.sflag [#allocation3], %s162
        %s164 = sand.u32 %s28, 1
        %s165 = smul.addr %s164, 80
        %s166 = scalar_lea.vmem [#allocation2], %s165
        // Predicated region
        $region33: #{tpu_custom_call.1} parent=31 // pred_check
          %p167 = pneg %p41
        $region34: #{tpu_custom_call.1} parent=31 // pred_check_branch
          %169 = sbr.rel (%p167) target = $region36
        $region35: #{tpu_custom_call.1} parent=31 // pred_region
          %170 = dma.done %s163, 1280
        $region36: #{tpu_custom_call.1} parent=31 // pred_fallthru
          _
        %s171 = sand.u32 %s28, 1
        %s172 = scalar_lea.sflag [#allocation3], %s171
        %s173 = sand.u32 %s28, 1
        %s174 = smul.addr %s173, 80
        %s175 = scalar_lea.vmem [#allocation2], %s174
        %p176 = pneg %p41
        %p177 = pneg %p38
        %p178 = pneg %p62
        %p179 = pneg %p59
        %p180 = pneg %p83
        %p181 = pneg %p80
        %p182 = pneg %p109
        %p183 = pneg %p106
        %s184 = sand.u32 %s96, 1
        %s185 = scalar_lea.sflag [#allocation4], %s184
        %s186 = sand.u32 %s96, 1
        %s187 = smul.addr %s186, 16
        %s188 = scalar_lea.vmem [#allocation5], %s187
        %s189 = smul.u32 2, %s20
        %s190 = smul.u32 2, %s20
        %v191 = vld [vmem:[%s2] sm:$0xff]
        %v192 = vld [vmem:[%s1] sm:$0xff]
        %v193 = vld [vmem:[%s166] sm:$0xff]
        %v194 = vld [vmem:[%s166 + $0x8] sm:$0xff]
        %v195 = vld [vmem:[%s166 + $0x10] sm:$0xff]
        %v196 = vld [vmem:[%s166 + $0x18] sm:$0xff]
        %v197 = vld [vmem:[%s166 + $0x20] sm:$0xff]
        %v198 = vld [vmem:[%s166 + $0x28] sm:$0xff]
        %v199 = vld [vmem:[%s166 + $0x30] sm:$0xff]
        %v200 = vld [vmem:[%s166 + $0x38] sm:$0xff]
        %v201 = vld [vmem:[%s166 + $0x40] sm:$0xf]
        %v202 = vld [vmem:[%s166 + $0x48] sm:$0xf]
        %204 = vset.pattern.permute.xlu0 0
        %205 = vperm.xlu0 %204, %v191
        %v206 = vpop.permute.xlu0 %205
        %vm208 = vcmask 293888
        %v210 = vsel %vm208, %v192, 0
        %vm212 = vcmask 1043456
        %v214 = vsel %vm212, %v201, 0
        %v217 = vsel %vm212, %v202, 0
        %219 = vmatprep.subr.mxu0 0.0
        %220 = vmatpush1.msra.mxu0 0.0
        %221 = vmatprep.subr.mxu0 0.0
        %222 = vmatpush1.msra.mxu0 0.0
        %223 = vmatprep.subr.mxu0 0.0
        %224 = vmatpush1.msra.mxu0 0.0
        %225 = vmatprep.subr.mxu0 0.0
        %226 = vmatpush1.msra.mxu0 0.0
        %227 = vmatprep.subr.mxu0 0.0
        %228 = vmatpush1.msra.mxu0 0.0
        %229 = vmatprep.subr.mxu0 0.0
        %230 = vmatpush1.msra.mxu0 0.0
        %231 = vmatprep.subr.mxu0 0.0
        %232 = vmatpush1.msra.mxu0 0.0
        %233 = vmatprep.subr.mxu0 0.0
        %234 = vmatpush1.msra.mxu0 0.0
        %235 = vmatprep.subr.mxu0 0.0
        %236 = vmatpush1.msra.mxu0 0.0
        %237 = vmatprep.subr.mxu0 0.0
        %238 = vmatpush1.msra.mxu0 0.0
        %239 = vmatprep.subr.mxu0 0.0
        %240 = vmatpush1.msra.mxu0 0.0
        %241 = vmatprep.subr.mxu0 %v217
        %242 = vmatpush1.msra.mxu0 %v214
        %243 = vmatprep.subr.mxu0 %v200
        %244 = vmatpush1.msra.mxu0 %v199
        %245 = vmatprep.subr.mxu0 %v198
        %246 = vmatpush1.msra.mxu0 %v197
        %247 = vmatprep.subr.mxu0 %v196
        %248 = vmatpush1.msra.mxu0 %v195
        %249 = vmatprep.subr.mxu0 %v194
        %250 = vmatpush1.msra.mxu0 %v193
        %251 = vmatprep.subr.mxu0 0.0
        %252 = vmatpush2.msra.mxu0 0.0
        %253 = vmatprep.subr.mxu0 0.0
        %254 = vmatpush2.msra.mxu0 0.0
        %255 = vmatprep.subr.mxu0 0.0
        %256 = vmatpush2.msra.mxu0 0.0
        %257 = vmatprep.subr.mxu0 0.0
        %258 = vmatpush2.msra.mxu0 0.0
        %259 = vmatprep.subr.mxu0 0.0
        %260 = vmatpush2.msra.mxu0 0.0
        %261 = vmatprep.subr.mxu0 0.0
        %262 = vmatpush2.msra.mxu0 0.0
        %263 = vmatprep.subr.mxu0 0.0
        %264 = vmatpush2.msra.mxu0 0.0
        %265 = vmatprep.subr.mxu0 0.0
        %266 = vmatpush2.msra.mxu0 0.0
        %267 = vmatprep.subr.mxu0 0.0
        %268 = vmatpush2.msra.mxu0 0.0
        %269 = vmatprep.subr.mxu0 0.0
        %270 = vmatpush2.msra.mxu0 0.0
        %271 = vmatprep.subr.mxu0 0.0
        %272 = vmatpush2.msra.mxu0 0.0
        %273 = vmatprep.subr.mxu0 0.0
        %274 = vmatpush2.msra.mxu0 0.0
        %275 = vmatprep.subr.mxu0 0.0
        %276 = vmatpush2.msra.mxu0 0.0
        %277 = vmatprep.subr.mxu0 0.0
        %278 = vmatpush2.msra.mxu0 0.0
        %279 = vmatprep.subr.mxu0 0.0
        %280 = vmatpush2.msra.mxu0 0.0
        %281 = vmatprep.subr.mxu0 0.0
        %282 = vmatpush2.msra.mxu0 0.0
        %283 = vmatprep.mubr.f32.mxu0 0.0
        %284 = vmatmul.mubr.f32.gmra.mxu0 %v210
        %v285 = vpop.f32.mrf.mxu0
        %v286 = vadd.f32 %v206, %v285
        %v287 = vpop.f32.mrf.mxu0
        %v288 = vadd.f32 %v206, %v287
        %289 = vdwg.mxu0
        %v290 = vmul.f32 %v286, 0.01
        %v291 = vmul.f32 %v288, 0.01
        %v292 = vmax.f32 %v286, %v290
        %v293 = vmax.f32 %v288, %v291
        %v294 = vadd.f32 %v292, %v293
        %295 = vadd.xlane.f32.xlu0 %v294
        %v296 = vpop.xlane.xlu0 %295
        %v297 = vmul.f32 %v296, 0.00390625
        %v298 = vsub.f32 %v292, %v297
        %v299 = vsub.f32 %v293, %v297
        %v300 = vmul.f32 %v298, %v298
        %v301 = vmul.f32 %v299, %v299
        %v302 = vadd.f32 %v300, %v301
        %303 = vadd.xlane.f32.xlu0 %v302
        %v304 = vpop.xlane.xlu0 %303
        %v305 = vmul.f32 %v304, 0.00390625
        %v306 = vadd.f32 %v305, 1e-05
        %v307 = vrsqrt.pop %v306
        %v308 = vmul.f32 %v307, %v191
        %310 = vset.pattern.permute.xlu0 1
        %311 = vperm.xlu0 %310, %v308
        %v312 = vpop.permute.xlu0 %311
        %v314 = vmul.f32 %v298, %v312
        %v315 = vmul.f32 %v299, %v312
        %316 = vset.pattern.permute.xlu0 2
        %317 = vperm.xlu0 %316, %v191
        %v318 = vpop.permute.xlu0 %317
        %v320 = vadd.f32 %v314, %v318
        %v321 = vadd.f32 %v315, %v318
        %322 = vst [vmem:[%s188] sm:$0xff] %v320
        %323 = vst [vmem:[%s188 + $0x8] sm:$0xff] %v321
        %s324 = sand.u32 %s96, 1
        %s325 = scalar_lea.sflag [#allocation4], %s324
        %s326 = sand.u32 %s96, 1
        %s327 = smul.addr %s326, 16
        %s328 = scalar_lea.vmem [#allocation5], %s327
        // Predicated region
        $region37: #{tpu_custom_call.1} parent=31 // pred_check
          %p329 = pneg %p106
        $region38: #{tpu_custom_call.1} parent=31 // pred_check_branch
          %331 = sbr.rel (%p329) target = $region40
        $region39: #{tpu_custom_call.1} parent=31 // pred_region
          %s332 = smul.u32 2, %s20
          %s334 = ssub.s32 256, 256
          %335 = vsyncadd %s325, %s334
          %s336 = smul.addr %s332, 128
          %s337 = scalar_lea.hbm %s3, %s336
          %s339 = sshll.u32 %s328, 4
          %s340 = int_to_ptr.vmem [resolvable:$true] %s339
          %342 = dma.vmem_to_hbm [thread:$0]  %s340, 256, %s337, %s325
        $region40: #{tpu_custom_call.1} parent=31 // pred_fallthru
          _
      $region32: #{tpu_custom_call.1} parent=5 // pred_fallthru
        _
      %p343 = scmp.le.s32.totalorder 2, %s15
      // Predicated region
      $region41: #{tpu_custom_call.1} parent=5 // pred_check
        %p344 = pneg %p343
      $region42: #{tpu_custom_call.1} parent=5 // pred_check_branch
        %346 = sbr.rel (%p344) target = $region44
      $region43: #{tpu_custom_call.1} parent=5 // pred_region
        %s347 = ssub.s32 %s15, 2
        // Predicated region
        $region45: #{tpu_custom_call.1} parent=43 // pred_check
          %p348 = pneg %p112
        $region46: #{tpu_custom_call.1} parent=43 // pred_check_branch
          %350 = sbr.rel (%p348) target = $region48
        $region47: #{tpu_custom_call.1} parent=43 // pred_region
          %s351 = sand.u32 %s97, 1
          %s352 = scalar_lea.sflag [#allocation4], %s351
          %s353 = sand.u32 %s97, 1
          %s354 = smul.addr %s353, 16
          %s355 = scalar_lea.vmem [#allocation5], %s354
          %356 = dma.done %s352, 256
        $region48: #{tpu_custom_call.1} parent=43 // pred_fallthru
          _
      $region44: #{tpu_custom_call.1} parent=5 // pred_fallthru
        _
    $region6: #{tpu_custom_call.1} parent=1 // loop_footer
      %s19 = sadd.s32 1, %s15
    $region7: #{tpu_custom_call.1} parent=1 // loop_footer_branch
      %14 = sbr.rel target = $region3
    $region8: #{tpu_custom_call.1} parent=1 // loop_exit
      _
    %357 = vsyncpa [#allocation3], 1
    %s358 = scalar_lea.sflag [#allocation3], 1
    %359 = vsyncpa %s358, 1
    %360 = vsyncpa [#allocation4], 1
    %s361 = scalar_lea.sflag [#allocation4], 1
    %362 = vsyncpa %s361, 1

</llo_original>
